<compile_context>
chip_gen: v6e
topology: v6e:2x2x1
jax: 0.10.0
libtpu: 0.0.40
codegen_flags: <defaults>
</compile_context>

<pallas_src>
import math

import jax
import jax.numpy as jnp
import numpy as np
from jax import lax
from jax.experimental import pallas as pl
from jax.experimental.pallas import tpu as pltpu

# Vocabulary sizes from TemporalEmbedding.__init__, ordered to match the
# forward's column convention: x[:,:,0]=month ... x[:,:,4]=second.
VOCAB_SIZES = (13, 32, 25, 60, 60)       # month, day, hour, minute, second
VOCAB_OFFSETS = tuple(
    int(v) for v in np.concatenate([[0], np.cumsum(VOCAB_SIZES)[:-1]]))
FUSED_VOCAB = 256                        # sum(VOCAB_SIZES)=190, padded to 256


def _round_up(x: int, m: int) -> int:
    return ((x + m - 1) // m) * m


def fixed_embedding_table(c_in: int, d_model: int) -> jnp.ndarray:
    """Deterministic sinusoidal table, identical to FixedEmbedding.__init__."""
    assert d_model % 2 == 0, "FixedEmbedding requires an even d_model"
    position = jnp.arange(c_in, dtype=jnp.float32)[:, None]           # (c_in, 1)
    div_term = jnp.exp(
        jnp.arange(0, d_model, 2, dtype=jnp.float32)
        * -(math.log(10000.0) / d_model))                             # (d_model/2,)
    w = jnp.zeros((c_in, d_model), dtype=jnp.float32)
    w = w.at[:, 0::2].set(jnp.sin(position * div_term))
    w = w.at[:, 1::2].set(jnp.cos(position * div_term))
    return w


def fused_embedding_table(d_model: int) -> jnp.ndarray:
    """Concatenate the 5 fixed tables along vocab and pad to FUSED_VOCAB rows."""
    tabs = [fixed_embedding_table(v, d_model) for v in VOCAB_SIZES]
    tab = jnp.concatenate(tabs, axis=0)                               # (190, d_model)
    return jnp.pad(tab, ((0, FUSED_VOCAB - tab.shape[0]), (0, 0)))    # (256, d_model)


def fused_embedding_tables_bf16(d_model: int):
    """bf16 hi/lo split of the fused f32 table (hi + lo ~= f32 table)."""
    tab = fused_embedding_table(d_model)
    hi = tab.astype(jnp.bfloat16)
    lo = (tab - hi.astype(jnp.float32)).astype(jnp.bfloat16)
    return hi, lo


def temporal_embedding_kernel(idx_ref, tab_hi_ref, tab_lo_ref, out_ref):
    """One grid step: (tm, 5) raw indices -> (tm, tn) summed embeddings."""
    tm = idx_ref.shape[0]
    vocab = tab_hi_ref.shape[0]
    idx = idx_ref[...]                                                # (tm, 5) i32, raw

    # Multi-hot mask over the fused vocab, built in booleans (5 compares + 4 ORs)
    # with a single convert at the end.  Clamp + cumulative vocab offset are
    # compile-time constants folded into the compare operands.
    iota = lax.broadcasted_iota(jnp.int32, (tm, vocab), 1)            # (tm, 256)
    hot = None
    for f in range(5):                                                # unrolled
        size, off = VOCAB_SIZES[f], VOCAB_OFFSETS[f]
        col = jnp.clip(idx[:, f:f + 1], 0, size - 1) + off            # (tm, 1)
        m = iota == col
        hot = m if hot is None else (hot | m)
    multi_hot = hot.astype(jnp.bfloat16)                              # 0/1 exact in bf16

    # Fused gather-and-sum as bf16 MXU matmuls with f32 accumulation.  The hi/lo
    # table split recovers near-f32 accuracy with two accumulating dots.
    acc = jnp.dot(multi_hot, tab_hi_ref[...], preferred_element_type=jnp.float32)
    acc = acc + jnp.dot(multi_hot, tab_lo_ref[...], preferred_element_type=jnp.float32)
    out_ref[...] = acc.astype(out_ref.dtype)


def temporal_embedding(x, d_model: int, tm: int = 1024, tn: int | None = None,
                       out_dtype=jnp.float32):
    """x: (B, L, 5) integer array. Returns (B, L, d_model) in out_dtype."""
    B, L, F = x.shape
    assert F == 5
    N = B * L

    idx = x.astype(jnp.int32).reshape(N, 5)

    # Column tile over d_model (only needed for very large d_model).
    if tn is None:
        if d_model > 1024 and d_model % 128 == 0:
            tn = next(t for t in (1024, 512, 256, 128) if d_model % t == 0)
        else:
            tn = d_model
    assert d_model % tn == 0
    n_col_tiles = d_model // tn

    # Row tile: big (amortize ~0.35us/step pipeline overhead), multiple of 8,
    # never over-padding tiny inputs, and capped so the row grid keeps >= 2
    # steps when possible (v7x megacore: 2 TensorCores need >= 2 grid steps).
    tm = max(int(tm), 8)
    tm_eff = min(tm, _round_up(N, 8))
    if N > 8:
        tm_eff = min(tm_eff, _round_up((N + 1) // 2, 8))
    tm_eff = max(8, tm_eff)
    n_pad = _round_up(N, tm_eff)
    if n_pad != N:
        idx = jnp.pad(idx, ((0, n_pad - N), (0, 0)))   # pad rows clamp to index 0

    tab_hi, tab_lo = fused_embedding_tables_bf16(d_model)

    out_bytes = jnp.dtype(out_dtype).itemsize
    # VMEM budget: double-buffered idx (lane-padded to 128) and out tiles,
    # single-buffered bf16 hi/lo tables, plus the in-kernel (tm, 256)
    # intermediates (i32 iota, bool mask, bf16 multi-hot) and the f32 acc.
    vmem_needed = (
        2 * tm_eff * 128 * 4
        + 2 * tm_eff * tn * out_bytes
        + (2 if n_col_tiles == 1 else 4) * FUSED_VOCAB * tn * 2
        + tm_eff * FUSED_VOCAB * (4 + 4 + 2)
        + tm_eff * tn * 4
        + (2 << 20))
    cp_kwargs = dict(dimension_semantics=("parallel", "parallel"))
    if vmem_needed > 16 * 1024 * 1024:
        try:
            vmem_cap = int(pltpu.get_tpu_info().vmem_capacity_bytes)
        except Exception:
            vmem_cap = 64 * 1024 * 1024   # conservative (v7x physical VMEM)
        cp_kwargs["vmem_limit_bytes"] = int(min(vmem_needed, vmem_cap // 2))
    compiler_params = pltpu.CompilerParams(**cp_kwargs)

    # Single-buffer the resident tables only when their block index never
    # changes (n_col_tiles == 1); otherwise keep default double-buffering.
    tab_kwargs = {"pipeline_mode": pl.Buffered(1)} if n_col_tiles == 1 else {}
    tab_spec_hi = pl.BlockSpec((FUSED_VOCAB, tn), lambda i, j: (0, j), **tab_kwargs)
    tab_spec_lo = pl.BlockSpec((FUSED_VOCAB, tn), lambda i, j: (0, j), **tab_kwargs)

    grid = (n_pad // tm_eff, n_col_tiles)
    out = pl.pallas_call(
        temporal_embedding_kernel,
        out_shape=jax.ShapeDtypeStruct((n_pad, d_model), out_dtype),
        grid_spec=pltpu.PrefetchScalarGridSpec(
            num_scalar_prefetch=0,
            grid=grid,
            in_specs=[
                pl.BlockSpec((tm_eff, 5), lambda i, j: (i, 0)),   # raw indices
                tab_spec_hi,                                      # bf16 table (hi)
                tab_spec_lo,                                      # bf16 table (lo)
            ],
            out_specs=pl.BlockSpec((tm_eff, tn), lambda i, j: (i, j)),
        ),
        compiler_params=compiler_params,
    )(idx, tab_hi, tab_lo)

    if n_pad != N:
        out = out[:N]
    return out.reshape(B, L, d_model)


def temporal_embedding_ref(x, d_model: int):
    """Pure-JAX reference (plain gathers + sum) for correctness checking."""
    idx = x.astype(jnp.int32)
    tabs = [fixed_embedding_table(v, d_model) for v in VOCAB_SIZES]
    out = jnp.zeros((*idx.shape[:2], d_model), jnp.float32)
    for col, tab in enumerate(tabs):
        out = out + jnp.take(tab, jnp.clip(idx[:, :, col], 0, tab.shape[0] - 1),
                             axis=0)
    return out


if __name__ == "__main__":
    key = jax.random.PRNGKey(0)

    def make_x(k, B, L):
        ks = jax.random.split(k, 5)
        cols = [jax.random.randint(kk, (B, L), 0, v)
                for kk, v in zip(ks, VOCAB_SIZES)]
        return jnp.stack(cols, axis=-1)                  # (B, L, 5) int32

    k1, k2, k3 = jax.random.split(key, 3)

    # Tolerance note: the bf16 hi/lo table split carries a worst-case absolute
    # error of a few 1e-6 per table entry (~2e-5 after summing 5 embeddings).
    RTOL, ATOL = 1e-5, 3e-5

    # Small shape consistent with the module's forward: (B=2, L=8, 5) -> (2, 8, 32).
    x1 = make_x(k1, 2, 8)
    out1 = jax.block_until_ready(temporal_embedding(x1, d_model=32))
    np.testing.assert_allclose(np.asarray(out1),
                               np.asarray(temporal_embedding_ref(x1, 32)),
                               rtol=RTOL, atol=ATOL)

    # Multi-step row grid and row padding (N=400, tm=128 -> 4 steps).
    x2 = make_x(k2, 4, 100)
    out2 = jax.block_until_ready(temporal_embedding(x2, d_model=64, tm=128))
    np.testing.assert_allclose(np.asarray(out2),
                               np.asarray(temporal_embedding_ref(x2, 64)),
                               rtol=RTOL, atol=ATOL)

    # Exercises the >=2-step cap (N=600, default tm=1024 -> tm_eff=304, 2 steps).
    x3 = make_x(k3, 2, 300)
    out3 = jax.block_until_ready(temporal_embedding(x3, d_model=256))
    np.testing.assert_allclose(np.asarray(out3),
                               np.asarray(temporal_embedding_ref(x3, 256)),
                               rtol=RTOL, atol=ATOL)

    print("KERNEL_OK")
</pallas_src>

<mosaic_0001>
module attributes {stable_mosaic.version = 11 : i64} {
  func.func @temporal_embedding_kernel(%arg0: i32, %arg1: i32, %arg2: memref<8x5xi32, #tpu.memory_space<vmem>>, %arg3: memref<256x32xbf16, #tpu.memory_space<vmem>>, %arg4: memref<256x32xbf16, #tpu.memory_space<vmem>>, %arg5: memref<8x32xf32, #tpu.memory_space<vmem>>) attributes {dimension_semantics = [#tpu.dimension_semantics<parallel>, #tpu.dimension_semantics<parallel>], iteration_bounds = array<i64: 2, 1>, scalar_prefetch = 0 : i64, scratch_operands = 0 : i64, tpu.core_type = #tpu.core_type<tc>, window_params = [{transform_indices = @transform_0, window_bounds = array<i64: 8, 5>}, {pipeline_mode = #tpu.pipeline_mode<synchronous>, transform_indices = @transform_1, window_bounds = array<i64: 256, 32>}, {pipeline_mode = #tpu.pipeline_mode<synchronous>, transform_indices = @transform_2, window_bounds = array<i64: 256, 32>}, {transform_indices = @transform_3, window_bounds = array<i64: 8, 32>}]} {
    %c0 = arith.constant 0 : index
    %c0_0 = arith.constant 0 : index
    %0 = vector.load %arg2[%c0, %c0_0] : memref<8x5xi32, #tpu.memory_space<vmem>>, vector<8x5xi32>
    %1 = tpu.iota {dimensions = array<i32: 1>} : vector<8x256xi32>
    %2 = vector.extract_strided_slice %0 {offsets = [0, 0], sizes = [8, 1], strides = [1, 1]} : vector<8x5xi32> to vector<8x1xi32>
    %c0_i32 = arith.constant 0 : i32
    %c12_i32 = arith.constant 12 : i32
    %3 = vector.broadcast %c0_i32 : i32 to vector<8x1xi32>
    %4 = arith.maxsi %3, %2 : vector<8x1xi32>
    %5 = vector.broadcast %c12_i32 : i32 to vector<8x1xi32>
    %6 = arith.minsi %5, %4 : vector<8x1xi32>
    %c0_i32_1 = arith.constant 0 : i32
    %7 = vector.broadcast %c0_i32_1 : i32 to vector<8x1xi32>
    %8 = arith.addi %6, %7 : vector<8x1xi32>
    %9 = vector.broadcast %8 : vector<8x1xi32> to vector<8x256xi32>
    %10 = arith.cmpi eq, %1, %9 : vector<8x256xi32>
    %11 = vector.extract_strided_slice %0 {offsets = [0, 1], sizes = [8, 1], strides = [1, 1]} : vector<8x5xi32> to vector<8x1xi32>
    %c0_i32_2 = arith.constant 0 : i32
    %c31_i32 = arith.constant 31 : i32
    %12 = vector.broadcast %c0_i32_2 : i32 to vector<8x1xi32>
    %13 = arith.maxsi %12, %11 : vector<8x1xi32>
    %14 = vector.broadcast %c31_i32 : i32 to vector<8x1xi32>
    %15 = arith.minsi %14, %13 : vector<8x1xi32>
    %c13_i32 = arith.constant 13 : i32
    %16 = vector.broadcast %c13_i32 : i32 to vector<8x1xi32>
    %17 = arith.addi %15, %16 : vector<8x1xi32>
    %18 = vector.broadcast %17 : vector<8x1xi32> to vector<8x256xi32>
    %19 = arith.cmpi eq, %1, %18 : vector<8x256xi32>
    %20 = arith.ori %10, %19 : vector<8x256xi1>
    %21 = vector.extract_strided_slice %0 {offsets = [0, 2], sizes = [8, 1], strides = [1, 1]} : vector<8x5xi32> to vector<8x1xi32>
    %c0_i32_3 = arith.constant 0 : i32
    %c24_i32 = arith.constant 24 : i32
    %22 = vector.broadcast %c0_i32_3 : i32 to vector<8x1xi32>
    %23 = arith.maxsi %22, %21 : vector<8x1xi32>
    %24 = vector.broadcast %c24_i32 : i32 to vector<8x1xi32>
    %25 = arith.minsi %24, %23 : vector<8x1xi32>
    %c45_i32 = arith.constant 45 : i32
    %26 = vector.broadcast %c45_i32 : i32 to vector<8x1xi32>
    %27 = arith.addi %25, %26 : vector<8x1xi32>
    %28 = vector.broadcast %27 : vector<8x1xi32> to vector<8x256xi32>
    %29 = arith.cmpi eq, %1, %28 : vector<8x256xi32>
    %30 = arith.ori %20, %29 : vector<8x256xi1>
    %31 = vector.extract_strided_slice %0 {offsets = [0, 3], sizes = [8, 1], strides = [1, 1]} : vector<8x5xi32> to vector<8x1xi32>
    %c0_i32_4 = arith.constant 0 : i32
    %c59_i32 = arith.constant 59 : i32
    %32 = vector.broadcast %c0_i32_4 : i32 to vector<8x1xi32>
    %33 = arith.maxsi %32, %31 : vector<8x1xi32>
    %34 = vector.broadcast %c59_i32 : i32 to vector<8x1xi32>
    %35 = arith.minsi %34, %33 : vector<8x1xi32>
    %c70_i32 = arith.constant 70 : i32
    %36 = vector.broadcast %c70_i32 : i32 to vector<8x1xi32>
    %37 = arith.addi %35, %36 : vector<8x1xi32>
    %38 = vector.broadcast %37 : vector<8x1xi32> to vector<8x256xi32>
    %39 = arith.cmpi eq, %1, %38 : vector<8x256xi32>
    %40 = arith.ori %30, %39 : vector<8x256xi1>
    %41 = vector.extract_strided_slice %0 {offsets = [0, 4], sizes = [8, 1], strides = [1, 1]} : vector<8x5xi32> to vector<8x1xi32>
    %c0_i32_5 = arith.constant 0 : i32
    %c59_i32_6 = arith.constant 59 : i32
    %42 = vector.broadcast %c0_i32_5 : i32 to vector<8x1xi32>
    %43 = arith.maxsi %42, %41 : vector<8x1xi32>
    %44 = vector.broadcast %c59_i32_6 : i32 to vector<8x1xi32>
    %45 = arith.minsi %44, %43 : vector<8x1xi32>
    %c130_i32 = arith.constant 130 : i32
    %46 = vector.broadcast %c130_i32 : i32 to vector<8x1xi32>
    %47 = arith.addi %45, %46 : vector<8x1xi32>
    %48 = vector.broadcast %47 : vector<8x1xi32> to vector<8x256xi32>
    %49 = arith.cmpi eq, %1, %48 : vector<8x256xi32>
    %50 = arith.ori %40, %49 : vector<8x256xi1>
    %51 = arith.extui %50 : vector<8x256xi1> to vector<8x256xi32>
    %52 = arith.sitofp %51 : vector<8x256xi32> to vector<8x256xf32>
    %53 = arith.truncf %52 : vector<8x256xf32> to vector<8x256xbf16>
    %c0_7 = arith.constant 0 : index
    %c0_8 = arith.constant 0 : index
    %54 = vector.load %arg3[%c0_7, %c0_8] : memref<256x32xbf16, #tpu.memory_space<vmem>>, vector<256x32xbf16>
    %cst = arith.constant dense<0.000000e+00> : vector<8x32xf32>
    %55 = tpu.matmul %53, %54, %cst {dimension_numbers = #tpu.dot_dimension_numbers<[1], [0], [0], [1], [0, 0, 1, 1], [], []>} : vector<8x256xbf16>, vector<256x32xbf16>, vector<8x32xf32> -> vector<8x32xf32>
    %c0_9 = arith.constant 0 : index
    %c0_10 = arith.constant 0 : index
    %56 = vector.load %arg4[%c0_9, %c0_10] : memref<256x32xbf16, #tpu.memory_space<vmem>>, vector<256x32xbf16>
    %cst_11 = arith.constant dense<0.000000e+00> : vector<8x32xf32>
    %57 = tpu.matmul %53, %56, %cst_11 {dimension_numbers = #tpu.dot_dimension_numbers<[1], [0], [0], [1], [0, 0, 1, 1], [], []>} : vector<8x256xbf16>, vector<256x32xbf16>, vector<8x32xf32> -> vector<8x32xf32>
    %58 = arith.addf %55, %57 : vector<8x32xf32>
    %c0_12 = arith.constant 0 : index
    %c0_13 = arith.constant 0 : index
    %59 = vector.load %arg5[%c0_12, %c0_13] : memref<8x32xf32, #tpu.memory_space<vmem>>, vector<8x32xf32>
    tpu.vector_store %arg5[%c0_12, %c0_13], %58 {strides = array<i32>} : memref<8x32xf32, #tpu.memory_space<vmem>>, vector<8x32xf32>,
    return
  }
  func.func @transform_0(%arg0: i32, %arg1: i32) -> (i32, i32) {
    %c0_i32 = arith.constant 0 : i32
    %c0_i32_0 = arith.constant 0 : i32
    return %arg0, %c0_i32 : i32, i32
  }
  func.func @transform_1(%arg0: i32, %arg1: i32) -> (i32, i32) {
    %c0_i32 = arith.constant 0 : i32
    %c0_i32_0 = arith.constant 0 : i32
    return %c0_i32, %arg1 : i32, i32
  }
  func.func @transform_2(%arg0: i32, %arg1: i32) -> (i32, i32) {
    %c0_i32 = arith.constant 0 : i32
    %c0_i32_0 = arith.constant 0 : i32
    return %c0_i32, %arg1 : i32, i32
  }
  func.func @transform_3(%arg0: i32, %arg1: i32) -> (i32, i32) {
    %c0_i32 = arith.constant 0 : i32
    return %arg0, %arg1 : i32, i32
  }
}

</mosaic_0001>

<llo_original>
// kernel: tpu_custom_call.1
$region0: #{tpu_custom_call.1}
  #allocation0 [shape = 'u32[]', space=smem, size = 0x4, offset = 0x4, fixed_abs, tag = 'smem constant byte address 0x4 - core index']
  #allocation1 [shape = 'u32[144,128]{1,0:T(1,128)}', space=vmem, size = 0x12000, scoped, tag = 'internal scratch']
  %s0 = inlined_call_operand.vmem [shape: s32[16,5], index: 0, kind: input, shape index: {}]
  %s1 = inlined_call_operand.vmem [shape: bf16[256,32], index: 1, kind: input, shape index: {}]
  %s2 = inlined_call_operand.vmem [shape: bf16[256,32], index: 2, kind: input, shape index: {}]
  %s3 = inlined_call_operand.hbm [shape: f32[16,32], index: 3, kind: output, shape index: {}]
  %s4 = sld [smem:[#allocation0]]
  $region45: #{tpu_custom_call.1} parent=0
    _
  %s6 = ssub.s32 1, %s4
  %s7 = scalar_select 0, %s6, %s4
  $region1: #{tpu_custom_call.1} parent=0
    #allocation2 [shape = 'u8[8192]{0}', space=vmem, size = 0x2000, scoped, tag = 'output window, operand 0']
    #allocation3 [shape = 's32[2]{0}', space=sflag, size = 0x8, scoped, tag = 'scoped memory for tpu_custom_call.1']
    %8 = vsyncpa [#allocation3], 0
    %s9 = scalar_lea.sflag [#allocation3], 1
    %10 = vsyncpa %s9, 0
    loop: start=0, step=1, limit=4
    $region2: #{tpu_custom_call.1} parent=1 // loop_pre_header
      _
    $region3: #{tpu_custom_call.1} parent=1 // loop_header
      %s12 = sphi 0, %s16
      %p13 = scmp.ge.s32.totalorder %s12, 4
      %s19 = sphi 0, %s31
      %s20 = sphi 0, %s27
      %s21 = sphi 0, %s19
      %s22 = sphi 0, %s20
      %s23 = sphi 0, %s21
      %s24 = sphi 0, %s22
      %s34 = sphi 0, %s36
      %s37 = sphi 0, %s34
      %s38 = sphi 0, %s37
      %s54 = sphi 0, %s38
      %s60 = sphi 0, %s62
      %s63 = sphi 0, %s60
      %s64 = sphi 0, %s63
      %s80 = sphi 0, %s64
      %s86 = sphi 0, %s88
      %s89 = sphi 0, %s86
      %s90 = sphi 0, %s89
      %s106 = sphi 0, %s90
      %s114 = sphi 0, %s116
      %s117 = sphi 0, %s114
      %s118 = sphi 0, %s117
      %s134 = sphi 0, %s118
    $region4: #{tpu_custom_call.1} parent=1 // loop_header_branch
      %15 = sbr.rel (%p13) target = $region8
    $region5: #{tpu_custom_call.1} parent=1 // loop_body
      %s17 = ssub.s32 %s12, 1
      %s18 = ssub.s32 %s12, 2
      %s25 = sadd.s32 1, %s20
      %p26 = scmp.ge.s32.totalorder %s25, 1
      %s27 = scalar_select %p26, 0, %s25
      %s28 = sadd.s32 1, %s19
      %s29 = scalar_select %p26, %s28, %s19
      %p30 = scmp.ge.s32.totalorder %s29, 2
      %s31 = scalar_select %p30, 0, %s29
      %s32 = ssub.s32 %s19, %s31
      %p33 = scmp.eq.s32.totalorder %s32, 0
      %s35 = sadd.s32 %s34, 1
      %s36 = scalar_select %p33, %s34, %s35
      %p39 = pneg %p33
      %p40 = scmp.eq.s32.totalorder %s12, 1
      %p41 = por %p39, %p40
      %p42 = scmp.ne.s32.totalorder %s34, %s37
      %p43 = scmp.eq.s32.totalorder %s12, 0
      %p44 = por %p42, %p43
      %p45 = scmp.ne.s32.totalorder %s34, %s37
      %p46 = scmp.eq.s32.totalorder %s17, 1
      %p47 = por %p45, %p46
      %p48 = scmp.ne.s32.totalorder %s37, %s38
      %p49 = scmp.eq.s32.totalorder %s17, 0
      %p50 = por %p48, %p49
      %p51 = scmp.ne.s32.totalorder %s37, %s38
      %p52 = scmp.eq.s32.totalorder %s18, 1
      %p53 = por %p51, %p52
      %p55 = scmp.ne.s32.totalorder %s38, %s54
      %p56 = scmp.eq.s32.totalorder %s18, 0
      %p57 = por %p55, %p56
      %s58 = ssub.s32 %s20, %s27
      %p59 = scmp.eq.s32.totalorder %s58, 0
      %s61 = sadd.s32 %s60, 1
      %s62 = scalar_select %p59, %s60, %s61
      %p65 = pneg %p59
      %p66 = scmp.eq.s32.totalorder %s12, 1
      %p67 = por %p65, %p66
      %p68 = scmp.ne.s32.totalorder %s60, %s63
      %p69 = scmp.eq.s32.totalorder %s12, 0
      %p70 = por %p68, %p69
      %p71 = scmp.ne.s32.totalorder %s60, %s63
      %p72 = scmp.eq.s32.totalorder %s17, 1
      %p73 = por %p71, %p72
      %p74 = scmp.ne.s32.totalorder %s63, %s64
      %p75 = scmp.eq.s32.totalorder %s17, 0
      %p76 = por %p74, %p75
      %p77 = scmp.ne.s32.totalorder %s63, %s64
      %p78 = scmp.eq.s32.totalorder %s18, 1
      %p79 = por %p77, %p78
      %p81 = scmp.ne.s32.totalorder %s64, %s80
      %p82 = scmp.eq.s32.totalorder %s18, 0
      %p83 = por %p81, %p82
      %s84 = ssub.s32 %s20, %s27
      %p85 = scmp.eq.s32.totalorder %s84, 0
      %s87 = sadd.s32 %s86, 1
      %s88 = scalar_select %p85, %s86, %s87
      %p91 = pneg %p85
      %p92 = scmp.eq.s32.totalorder %s12, 1
      %p93 = por %p91, %p92
      %p94 = scmp.ne.s32.totalorder %s86, %s89
      %p95 = scmp.eq.s32.totalorder %s12, 0
      %p96 = por %p94, %p95
      %p97 = scmp.ne.s32.totalorder %s86, %s89
      %p98 = scmp.eq.s32.totalorder %s17, 1
      %p99 = por %p97, %p98
      %p100 = scmp.ne.s32.totalorder %s89, %s90
      %p101 = scmp.eq.s32.totalorder %s17, 0
      %p102 = por %p100, %p101
      %p103 = scmp.ne.s32.totalorder %s89, %s90
      %p104 = scmp.eq.s32.totalorder %s18, 1
      %p105 = por %p103, %p104
      %p107 = scmp.ne.s32.totalorder %s90, %s106
      %p108 = scmp.eq.s32.totalorder %s18, 0
      %p109 = por %p107, %p108
      %s110 = ssub.s32 %s19, %s31
      %s111 = ssub.s32 %s20, %s27
      %s112 = sor.u32 %s110, %s111
      %p113 = scmp.eq.s32.totalorder %s112, 0
      %s115 = sadd.s32 %s114, 1
      %s116 = scalar_select %p113, %s114, %s115
      %p119 = pneg %p113
      %p120 = scmp.eq.s32.totalorder %s12, 1
      %p121 = por %p119, %p120
      %p122 = scmp.ne.s32.totalorder %s114, %s117
      %p123 = scmp.eq.s32.totalorder %s12, 0
      %p124 = por %p122, %p123
      %p125 = scmp.ne.s32.totalorder %s114, %s117
      %p126 = scmp.eq.s32.totalorder %s17, 1
      %p127 = por %p125, %p126
      %p128 = scmp.ne.s32.totalorder %s117, %s118
      %p129 = scmp.eq.s32.totalorder %s17, 0
      %p130 = por %p128, %p129
      %p131 = scmp.ne.s32.totalorder %s117, %s118
      %p132 = scmp.eq.s32.totalorder %s18, 1
      %p133 = por %p131, %p132
      %p135 = scmp.ne.s32.totalorder %s118, %s134
      %p136 = scmp.eq.s32.totalorder %s18, 0
      %p137 = por %p135, %p136
      %p138 = scmp.le.s32.totalorder 1, %s12
      %p139 = scmp.lt.s32.totalorder %s12, 3
      %p140 = pnand %p138, %p139
      %p141 = pneg %p140
      // Predicated region
      $region9: #{tpu_custom_call.1} parent=5 // pred_check
        _
      $region10: #{tpu_custom_call.1} parent=5 // pred_check_branch
        %143 = sbr.rel (%p140) target = $region12
      $region11: #{tpu_custom_call.1} parent=5 // pred_region
        %s144 = ssub.s32 %s12, 1
        // Predicated region
        $region13: #{tpu_custom_call.1} parent=11 // pred_check
          %p145 = pneg %p76
        $region14: #{tpu_custom_call.1} parent=11 // pred_check_branch
          %147 = sbr.rel (%p145) target = $region16
        $region15: #{tpu_custom_call.1} parent=11 // pred_region
          %p148 = scmp.lt.s32.totalorder %s22, 0
          %s149 = scalar_select %p148, %s22, 0
          %s150 = smul.addr %s149, 4
          %s151 = scalar_lea.vmem %s1, %s150
        $region16: #{tpu_custom_call.1} parent=11 // pred_fallthru
          _
        // Predicated region
        $region17: #{tpu_custom_call.1} parent=11 // pred_check
          %p152 = pneg %p102
        $region18: #{tpu_custom_call.1} parent=11 // pred_check_branch
          %154 = sbr.rel (%p152) target = $region20
        $region19: #{tpu_custom_call.1} parent=11 // pred_region
          %p155 = scmp.lt.s32.totalorder %s22, 0
          %s156 = scalar_select %p155, %s22, 0
          %s157 = smul.addr %s156, 4
          %s158 = scalar_lea.vmem %s2, %s157
        $region20: #{tpu_custom_call.1} parent=11 // pred_fallthru
          _
      $region12: #{tpu_custom_call.1} parent=5 // pred_fallthru
        _
      %p159 = scmp.lt.s32.totalorder %s12, 2
      // Predicated region
      $region21: #{tpu_custom_call.1} parent=5 // pred_check
        %p160 = pneg %p159
      $region22: #{tpu_custom_call.1} parent=5 // pred_check_branch
        %162 = sbr.rel (%p160) target = $region24
      $region23: #{tpu_custom_call.1} parent=5 // pred_region
        // Predicated region
        $region25: #{tpu_custom_call.1} parent=23 // pred_check
          %p163 = pneg %p44
        $region26: #{tpu_custom_call.1} parent=23 // pred_check_branch
          %165 = sbr.rel (%p163) target = $region28
        $region27: #{tpu_custom_call.1} parent=23 // pred_region
          %p166 = scmp.lt.s32.totalorder %s19, 1
          %s167 = scalar_select %p166, %s19, 1
          %s168 = smul.addr %s167, 8
          %s169 = scalar_lea.vmem %s0, %s168
        $region28: #{tpu_custom_call.1} parent=23 // pred_fallthru
          _
      $region24: #{tpu_custom_call.1} parent=5 // pred_fallthru
        _
      %p170 = scmp.le.s32.totalorder 1, %s12
      %p171 = scmp.lt.s32.totalorder %s12, 3
      %p172 = pnand %p170, %p171
      %p173 = pneg %p172
      // Predicated region
      $region29: #{tpu_custom_call.1} parent=5 // pred_check
        _
      $region30: #{tpu_custom_call.1} parent=5 // pred_check_branch
        %175 = sbr.rel (%p172) target = $region32
      $region31: #{tpu_custom_call.1} parent=5 // pred_region
        %s176 = ssub.s32 %s12, 1
        %p177 = scmp.lt.s32.totalorder %s21, 1
        %s178 = scalar_select %p177, %s21, 1
        %s179 = smul.addr %s178, 8
        %s180 = scalar_lea.vmem %s0, %s179
        %p181 = pneg %p50
        %p182 = pneg %p47
        %p183 = scmp.lt.s32.totalorder %s22, 0
        %s184 = scalar_select %p183, %s22, 0
        %s185 = smul.addr %s184, 4
        %s186 = scalar_lea.vmem %s1, %s185
        %p187 = pneg %p76
        %p188 = pneg %p73
        %p189 = scmp.lt.s32.totalorder %s22, 0
        %s190 = scalar_select %p189, %s22, 0
        %s191 = smul.addr %s190, 4
        %s192 = scalar_lea.vmem %s2, %s191
        %p193 = pneg %p102
        %p194 = pneg %p99
        %p195 = pneg %p130
        %p196 = pneg %p127
        %s197 = sand.u32 %s117, 1
        %s198 = scalar_lea.sflag [#allocation3], %s197
        %s199 = sand.u32 %s117, 1
        %s200 = smul.addr %s199, 8
        %s201 = scalar_lea.vmem [#allocation2], %s200
        %p202 = scmp.lt.s32.totalorder %s21, 1
        %s203 = scalar_select %p202, %s21, 1
        %s204 = smul.addr %s203, 8
        %s205 = scalar_lea.vmem %s0, %s204
        %p206 = scmp.lt.s32.totalorder %s22, 0
        %s207 = scalar_select %p206, %s22, 0
        %s208 = smul.addr %s207, 4
        %s209 = scalar_lea.vmem %s1, %s208
        %p210 = scmp.lt.s32.totalorder %s22, 0
        %s211 = scalar_select %p210, %s22, 0
        %s212 = smul.addr %s211, 4
        %s213 = scalar_lea.vmem %s2, %s212
        %v215 = vld [vmem:[%s205] sm:$0xff]
        %v216 = vlaneseq
        %v217 = vand.u32 %v216, 127
        %v218 = vadd.s32 %v217, 128
        %vm219 = vcmp.gt.s32.totalorder %v215, 0
        %v220 = vsel %vm219, %v215, 0
        %vm221 = vcmp.lt.s32.totalorder %v220, 12
        %v222 = vsel %vm221, %v220, 12
        %223 = vset.pattern.permute.xlu0 0
        %224 = vperm.xlu0 %223, %v222
        %v225 = vpop.permute.xlu0 %224
        %vm226 = vcmp.eq.s32.totalorder %v217, %v225
        %vm227 = vcmp.eq.s32.totalorder %v218, %v225
        %vm228 = vcmp.lt.s32.totalorder %v220, 31
        %v229 = vsel %vm228, %v220, 31
        %v230 = vadd.s32 %v229, 13
        %231 = vset.pattern.permute.xlu0 1
        %232 = vperm.xlu0 %231, %v230
        %v233 = vpop.permute.xlu0 %232
        %vm234 = vcmp.eq.s32.totalorder %v217, %v233
        %vm235 = vcmp.eq.s32.totalorder %v218, %v233
        %vm236 = vmor %vm226, %vm234
        %vm237 = vmor %vm227, %vm235
        %vm238 = vcmp.lt.s32.totalorder %v220, 24
        %v239 = vsel %vm238, %v220, 24
        %v240 = vadd.s32 %v239, 45
        %241 = vset.pattern.permute.xlu0 2
        %242 = vperm.xlu0 %241, %v240
        %v243 = vpop.permute.xlu0 %242
        %vm244 = vcmp.eq.s32.totalorder %v217, %v243
        %vm245 = vcmp.eq.s32.totalorder %v218, %v243
        %vm246 = vmor %vm236, %vm244
        %vm247 = vmor %vm237, %vm245
        %vm248 = vcmp.lt.s32.totalorder %v220, 59
        %v249 = vsel %vm248, %v220, 59
        %v250 = vadd.s32 %v249, 70
        %251 = vset.pattern.permute.xlu0 3
        %252 = vperm.xlu0 %251, %v250
        %v253 = vpop.permute.xlu0 %252
        %vm254 = vcmp.eq.s32.totalorder %v217, %v253
        %vm255 = vcmp.eq.s32.totalorder %v218, %v253
        %vm256 = vmor %vm246, %vm254
        %vm257 = vmor %vm247, %vm255
        %v258 = vadd.s32 %v249, 130
        %259 = vset.pattern.permute.xlu0 4
        %260 = vperm.xlu0 %259, %v258
        %v261 = vpop.permute.xlu0 %260
        %vm262 = vcmp.eq.s32.totalorder %v217, %v261
        %vm263 = vcmp.eq.s32.totalorder %v218, %v261
        %vm264 = vmor %vm256, %vm262
        %vm265 = vmor %vm257, %vm263
        %v266 = vsel %vm264, 1, 0
        %v267 = vsel %vm265, 1, 0
        %v268 = vcvt.s32.f32 %v266
        %v269 = vcvt.s32.f32 %v267
        %v270 = vpack.c.bf16 %v268, %v268
        %v271 = vpack.c.bf16 %v269, %v269
        %v272 = vld [vmem:[%s209] sm:$0xf]
        %v273 = vld [vmem:[%s209 + $0x4] sm:$0xf]
        %v274 = vld [vmem:[%s209 + $0x8] sm:$0xf]
        %v275 = vld [vmem:[%s209 + $0xc] sm:$0xf]
        %v276 = vld [vmem:[%s209 + $0x10] sm:$0xf]
        %v277 = vld [vmem:[%s209 + $0x14] sm:$0xf]
        %v278 = vld [vmem:[%s209 + $0x18] sm:$0xf]
        %v279 = vld [vmem:[%s209 + $0x1c] sm:$0xf]
        %v280 = vld [vmem:[%s209 + $0x20] sm:$0xf]
        %v281 = vld [vmem:[%s209 + $0x24] sm:$0xf]
        %v282 = vld [vmem:[%s209 + $0x28] sm:$0xf]
        %v283 = vld [vmem:[%s209 + $0x2c] sm:$0xf]
        %v284 = vld [vmem:[%s209 + $0x30] sm:$0xf]
        %v285 = vld [vmem:[%s209 + $0x34] sm:$0xf]
        %v286 = vld [vmem:[%s209 + $0x38] sm:$0xf]
        %v287 = vld [vmem:[%s209 + $0x3c] sm:$0xf]
        %v288 = vld [vmem:[%s209 + $0x40] sm:$0xf]
        %v289 = vld [vmem:[%s209 + $0x44] sm:$0xf]
        %v290 = vld [vmem:[%s209 + $0x48] sm:$0xf]
        %v291 = vld [vmem:[%s209 + $0x4c] sm:$0xf]
        %v292 = vld [vmem:[%s209 + $0x50] sm:$0xf]
        %v293 = vld [vmem:[%s209 + $0x54] sm:$0xf]
        %v294 = vld [vmem:[%s209 + $0x58] sm:$0xf]
        %v295 = vld [vmem:[%s209 + $0x5c] sm:$0xf]
        %v296 = vld [vmem:[%s209 + $0x60] sm:$0xf]
        %v297 = vld [vmem:[%s209 + $0x64] sm:$0xf]
        %v298 = vld [vmem:[%s209 + $0x68] sm:$0xf]
        %v299 = vld [vmem:[%s209 + $0x6c] sm:$0xf]
        %v300 = vld [vmem:[%s209 + $0x70] sm:$0xf]
        %v301 = vld [vmem:[%s209 + $0x74] sm:$0xf]
        %v302 = vld [vmem:[%s209 + $0x78] sm:$0xf]
        %v303 = vld [vmem:[%s209 + $0x7c] sm:$0xf]
        %v304 = vld [vmem:[%s213] sm:$0xf]
        %v305 = vld [vmem:[%s213 + $0x4] sm:$0xf]
        %v306 = vld [vmem:[%s213 + $0x8] sm:$0xf]
        %v307 = vld [vmem:[%s213 + $0xc] sm:$0xf]
        %v308 = vld [vmem:[%s213 + $0x10] sm:$0xf]
        %v309 = vld [vmem:[%s213 + $0x14] sm:$0xf]
        %v310 = vld [vmem:[%s213 + $0x18] sm:$0xf]
        %v311 = vld [vmem:[%s213 + $0x1c] sm:$0xf]
        %v312 = vld [vmem:[%s213 + $0x20] sm:$0xf]
        %v313 = vld [vmem:[%s213 + $0x24] sm:$0xf]
        %v314 = vld [vmem:[%s213 + $0x28] sm:$0xf]
        %v315 = vld [vmem:[%s213 + $0x2c] sm:$0xf]
        %v316 = vld [vmem:[%s213 + $0x30] sm:$0xf]
        %v317 = vld [vmem:[%s213 + $0x34] sm:$0xf]
        %v318 = vld [vmem:[%s213 + $0x38] sm:$0xf]
        %v319 = vld [vmem:[%s213 + $0x3c] sm:$0xf]
        %v320 = vld [vmem:[%s213 + $0x40] sm:$0xf]
        %v321 = vld [vmem:[%s213 + $0x44] sm:$0xf]
        %v322 = vld [vmem:[%s213 + $0x48] sm:$0xf]
        %v323 = vld [vmem:[%s213 + $0x4c] sm:$0xf]
        %v324 = vld [vmem:[%s213 + $0x50] sm:$0xf]
        %v325 = vld [vmem:[%s213 + $0x54] sm:$0xf]
        %v326 = vld [vmem:[%s213 + $0x58] sm:$0xf]
        %v327 = vld [vmem:[%s213 + $0x5c] sm:$0xf]
        %v328 = vld [vmem:[%s213 + $0x60] sm:$0xf]
        %v329 = vld [vmem:[%s213 + $0x64] sm:$0xf]
        %v330 = vld [vmem:[%s213 + $0x68] sm:$0xf]
        %v331 = vld [vmem:[%s213 + $0x6c] sm:$0xf]
        %v332 = vld [vmem:[%s213 + $0x70] sm:$0xf]
        %v333 = vld [vmem:[%s213 + $0x74] sm:$0xf]
        %v334 = vld [vmem:[%s213 + $0x78] sm:$0xf]
        %v335 = vld [vmem:[%s213 + $0x7c] sm:$0xf]
        %v368 = vunpack.c.l.b16 %v304
        %v369 = vunpack.c.l.b16 %v305
        %v370 = vunpack.c.l.b16 %v306
        %v371 = vunpack.c.l.b16 %v307
        %v372 = vunpack.c.l.b16 %v308
        %v373 = vunpack.c.l.b16 %v309
        %v374 = vunpack.c.l.b16 %v310
        %v375 = vunpack.c.l.b16 %v311
        %v376 = vunpack.c.l.b16 %v312
        %v377 = vunpack.c.l.b16 %v313
        %v378 = vunpack.c.l.b16 %v314
        %v379 = vunpack.c.l.b16 %v315
        %v380 = vunpack.c.l.b16 %v316
        %v381 = vunpack.c.l.b16 %v317
        %v382 = vunpack.c.l.b16 %v318
        %v383 = vunpack.c.l.b16 %v319
        %v384 = vunpack.c.l.b16 %v320
        %v385 = vunpack.c.l.b16 %v321
        %v386 = vunpack.c.l.b16 %v322
        %v387 = vunpack.c.l.b16 %v323
        %v388 = vunpack.c.l.b16 %v324
        %v389 = vunpack.c.l.b16 %v325
        %v390 = vunpack.c.l.b16 %v326
        %v391 = vunpack.c.l.b16 %v327
        %v392 = vunpack.c.l.b16 %v328
        %v393 = vunpack.c.l.b16 %v329
        %v394 = vunpack.c.l.b16 %v330
        %v395 = vunpack.c.l.b16 %v331
        %v396 = vunpack.c.l.b16 %v332
        %v397 = vunpack.c.l.b16 %v333
        %v398 = vunpack.c.l.b16 %v334
        %v399 = vunpack.c.l.b16 %v335
        %v400 = vpack.c.b16 %v369, %v368
        %v401 = vpack.c.b16 %v371, %v370
        %v402 = vpack.c.b16 %v373, %v372
        %v403 = vpack.c.b16 %v375, %v374
        %v404 = vpack.c.b16 %v377, %v376
        %v405 = vpack.c.b16 %v379, %v378
        %v406 = vpack.c.b16 %v381, %v380
        %v407 = vpack.c.b16 %v383, %v382
        %v408 = vpack.c.b16 %v385, %v384
        %v409 = vpack.c.b16 %v387, %v386
        %v410 = vpack.c.b16 %v389, %v388
        %v411 = vpack.c.b16 %v391, %v390
        %v412 = vpack.c.b16 %v393, %v392
        %v413 = vpack.c.b16 %v395, %v394
        %v414 = vpack.c.b16 %v397, %v396
        %v415 = vpack.c.b16 %v399, %v398
        %432 = vmatprep.subr.bf16.mxu0 0
        %433 = vmatpush1.bf16.msra.mxu0 %v407
        %434 = vmatprep.subr.bf16.mxu0 0
        %435 = vmatpush1.bf16.msra.mxu0 %v406
        %436 = vmatprep.subr.bf16.mxu0 0
        %437 = vmatpush1.bf16.msra.mxu0 %v405
        %438 = vmatprep.subr.bf16.mxu0 0
        %439 = vmatpush1.bf16.msra.mxu0 %v404
        %440 = vmatprep.subr.bf16.mxu0 0
        %441 = vmatpush1.bf16.msra.mxu0 %v403
        %442 = vmatprep.subr.bf16.mxu0 0
        %443 = vmatpush1.bf16.msra.mxu0 %v402
        %444 = vmatprep.subr.bf16.mxu0 0
        %445 = vmatpush1.bf16.msra.mxu0 %v401
        %446 = vmatprep.subr.bf16.mxu0 0
        %447 = vmatpush1.bf16.msra.mxu0 %v400
        %448 = vmatprep.subr.bf16.mxu0 0
        %449 = vmatpush2.bf16.msra.mxu0 %v415
        %450 = vmatprep.subr.bf16.mxu0 0
        %451 = vmatpush2.bf16.msra.mxu0 %v414
        %452 = vmatprep.subr.bf16.mxu0 0
        %453 = vmatpush2.bf16.msra.mxu0 %v413
        %454 = vmatprep.subr.bf16.mxu0 0
        %455 = vmatpush2.bf16.msra.mxu0 %v412
        %456 = vmatprep.subr.bf16.mxu0 0
        %457 = vmatpush2.bf16.msra.mxu0 %v411
        %458 = vmatprep.subr.bf16.mxu0 0
        %459 = vmatpush2.bf16.msra.mxu0 %v410
        %460 = vmatprep.subr.bf16.mxu0 0
        %461 = vmatpush2.bf16.msra.mxu0 %v409
        %462 = vmatprep.subr.bf16.mxu0 0
        %463 = vmatpush2.bf16.msra.mxu0 %v408
        %464 = vmatprep.mubr.bf16.mxu0 %v271
        %465 = vmatmul.mubr.bf16.gmra.mxu0 %v270
        %v466 = vpop.f32.mrf.mxu0
        %v467 = vadd.f32 0.0, %v466
        %v468 = vpop.f32.mrf.mxu0
        %v469 = vpop.f32.mrf.mxu0
        %v470 = vpop.f32.mrf.mxu0
        %471 = vdwg.mxu0
        %v504 = vunpack.c.l.b16 %v272
        %v505 = vunpack.c.l.b16 %v273
        %v506 = vunpack.c.l.b16 %v274
        %v507 = vunpack.c.l.b16 %v275
        %v508 = vunpack.c.l.b16 %v276
        %v509 = vunpack.c.l.b16 %v277
        %v510 = vunpack.c.l.b16 %v278
        %v511 = vunpack.c.l.b16 %v279
        %v512 = vunpack.c.l.b16 %v280
        %v513 = vunpack.c.l.b16 %v281
        %v514 = vunpack.c.l.b16 %v282
        %v515 = vunpack.c.l.b16 %v283
        %v516 = vunpack.c.l.b16 %v284
        %v517 = vunpack.c.l.b16 %v285
        %v518 = vunpack.c.l.b16 %v286
        %v519 = vunpack.c.l.b16 %v287
        %v520 = vunpack.c.l.b16 %v288
        %v521 = vunpack.c.l.b16 %v289
        %v522 = vunpack.c.l.b16 %v290
        %v523 = vunpack.c.l.b16 %v291
        %v524 = vunpack.c.l.b16 %v292
        %v525 = vunpack.c.l.b16 %v293
        %v526 = vunpack.c.l.b16 %v294
        %v527 = vunpack.c.l.b16 %v295
        %v528 = vunpack.c.l.b16 %v296
        %v529 = vunpack.c.l.b16 %v297
        %v530 = vunpack.c.l.b16 %v298
        %v531 = vunpack.c.l.b16 %v299
        %v532 = vunpack.c.l.b16 %v300
        %v533 = vunpack.c.l.b16 %v301
        %v534 = vunpack.c.l.b16 %v302
        %v535 = vunpack.c.l.b16 %v303
        %v536 = vpack.c.b16 %v505, %v504
        %v537 = vpack.c.b16 %v507, %v506
        %v538 = vpack.c.b16 %v509, %v508
        %v539 = vpack.c.b16 %v511, %v510
        %v540 = vpack.c.b16 %v513, %v512
        %v541 = vpack.c.b16 %v515, %v514
        %v542 = vpack.c.b16 %v517, %v516
        %v543 = vpack.c.b16 %v519, %v518
        %v544 = vpack.c.b16 %v521, %v520
        %v545 = vpack.c.b16 %v523, %v522
        %v546 = vpack.c.b16 %v525, %v524
        %v547 = vpack.c.b16 %v527, %v526
        %v548 = vpack.c.b16 %v529, %v528
        %v549 = vpack.c.b16 %v531, %v530
        %v550 = vpack.c.b16 %v533, %v532
        %v551 = vpack.c.b16 %v535, %v534
        %568 = vmatprep.subr.bf16.mxu0 0
        %569 = vmatpush1.bf16.msra.mxu0 %v543
        %570 = vmatprep.subr.bf16.mxu0 0
        %571 = vmatpush1.bf16.msra.mxu0 %v542
        %572 = vmatprep.subr.bf16.mxu0 0
        %573 = vmatpush1.bf16.msra.mxu0 %v541
        %574 = vmatprep.subr.bf16.mxu0 0
        %575 = vmatpush1.bf16.msra.mxu0 %v540
        %576 = vmatprep.subr.bf16.mxu0 0
        %577 = vmatpush1.bf16.msra.mxu0 %v539
        %578 = vmatprep.subr.bf16.mxu0 0
        %579 = vmatpush1.bf16.msra.mxu0 %v538
        %580 = vmatprep.subr.bf16.mxu0 0
        %581 = vmatpush1.bf16.msra.mxu0 %v537
        %582 = vmatprep.subr.bf16.mxu0 0
        %583 = vmatpush1.bf16.msra.mxu0 %v536
        %584 = vmatprep.subr.bf16.mxu0 0
        %585 = vmatpush2.bf16.msra.mxu0 %v551
        %586 = vmatprep.subr.bf16.mxu0 0
        %587 = vmatpush2.bf16.msra.mxu0 %v550
        %588 = vmatprep.subr.bf16.mxu0 0
        %589 = vmatpush2.bf16.msra.mxu0 %v549
        %590 = vmatprep.subr.bf16.mxu0 0
        %591 = vmatpush2.bf16.msra.mxu0 %v548
        %592 = vmatprep.subr.bf16.mxu0 0
        %593 = vmatpush2.bf16.msra.mxu0 %v547
        %594 = vmatprep.subr.bf16.mxu0 0
        %595 = vmatpush2.bf16.msra.mxu0 %v546
        %596 = vmatprep.subr.bf16.mxu0 0
        %597 = vmatpush2.bf16.msra.mxu0 %v545
        %598 = vmatprep.subr.bf16.mxu0 0
        %599 = vmatpush2.bf16.msra.mxu0 %v544
        %600 = vmatprep.mubr.bf16.mxu0 %v271
        %601 = vmatmul.mubr.bf16.gmra.mxu0 %v270
        %v602 = vpop.f32.mrf.mxu0
        %v603 = vadd.f32 %v467, %v602
        %v604 = vpop.f32.mrf.mxu0
        %v605 = vpop.f32.mrf.mxu0
        %v606 = vpop.f32.mrf.mxu0
        %607 = vdwg.mxu0
        %vm608 = vcmask 261120
        %609 = vst.msk [vmem:[%s201] sm:$0xff] %vm608, %v603
        %s610 = sand.u32 %s117, 1
        %s611 = scalar_lea.sflag [#allocation3], %s610
        %s612 = sand.u32 %s117, 1
        %s613 = smul.addr %s612, 8
        %s614 = scalar_lea.vmem [#allocation2], %s613
        // Predicated region
        $region33: #{tpu_custom_call.1} parent=31 // pred_check
          %p615 = pneg %p127
        $region34: #{tpu_custom_call.1} parent=31 // pred_check_branch
          %617 = sbr.rel (%p615) target = $region36
        $region35: #{tpu_custom_call.1} parent=31 // pred_region
          %s619 = ssub.s32 128, 128
          %620 = vsyncadd %s611, %s619
          %s621 = sadd.s32 %s22, %s21
          %s622 = smul.addr %s621, 128
          %s623 = scalar_lea.hbm %s3, %s622
          %s625 = sshll.u32 %s614, 4
          %s626 = int_to_ptr.vmem [resolvable:$true] %s625
          %628 = dma.vmem_to_hbm [thread:$0]  %s626, 128, %s623, %s611
        $region36: #{tpu_custom_call.1} parent=31 // pred_fallthru
          _
      $region32: #{tpu_custom_call.1} parent=5 // pred_fallthru
        _
      %p629 = scmp.le.s32.totalorder 2, %s12
      // Predicated region
      $region37: #{tpu_custom_call.1} parent=5 // pred_check
        %p630 = pneg %p629
      $region38: #{tpu_custom_call.1} parent=5 // pred_check_branch
        %632 = sbr.rel (%p630) target = $region40
      $region39: #{tpu_custom_call.1} parent=5 // pred_region
        %s633 = ssub.s32 %s12, 2
        // Predicated region
        $region41: #{tpu_custom_call.1} parent=39 // pred_check
          %p634 = pneg %p133
        $region42: #{tpu_custom_call.1} parent=39 // pred_check_branch
          %636 = sbr.rel (%p634) target = $region44
        $region43: #{tpu_custom_call.1} parent=39 // pred_region
          %s637 = sand.u32 %s118, 1
          %s638 = scalar_lea.sflag [#allocation3], %s637
          %s639 = sand.u32 %s118, 1
          %s640 = smul.addr %s639, 8
          %s641 = scalar_lea.vmem [#allocation2], %s640
          %642 = dma.done %s638, 128
        $region44: #{tpu_custom_call.1} parent=39 // pred_fallthru
          _
      $region40: #{tpu_custom_call.1} parent=5 // pred_fallthru
        _
    $region6: #{tpu_custom_call.1} parent=1 // loop_footer
      %s16 = sadd.s32 1, %s12
    $region7: #{tpu_custom_call.1} parent=1 // loop_footer_branch
      %11 = sbr.rel target = $region3
    $region8: #{tpu_custom_call.1} parent=1 // loop_exit
      _
    %643 = vsyncpa [#allocation3], 1
    %s644 = scalar_lea.sflag [#allocation3], 1
    %645 = vsyncpa %s644, 1

</llo_original>
